<compile_context>
chip_gen: v7x
topology: tpu7x:2x2x1
jax: 0.10.0
libtpu: 0.0.40
codegen_flags: <defaults>
</compile_context>

<pallas_src>
import functools

import jax
import jax.numpy as jnp
import numpy as np
from jax import lax
from jax.experimental import pallas as pl
from jax.experimental.pallas import tpu as pltpu


def _shift_flat(x, d):
    """out[:, f] = x[:, f + d], zero where f + d falls outside [0, F). d is static."""
    cin, F = x.shape
    if d == 0:
        return x
    if d > 0:
        return jnp.concatenate([x[:, d:], jnp.zeros((cin, d), x.dtype)], axis=1)
    return jnp.concatenate([jnp.zeros((cin, -d), x.dtype), x[:, :F + d]], axis=1)


def conv3x3_relu_kernel(x_ref, w_ref, b_ref, o_ref, patches_ref, *, H, W):
    # x_ref       : (1, Cin, H*W)   one batch element, image flattened on lanes
    # w_ref       : (Cout, 9*Cin)   filter, tap-major then Cin
    # b_ref       : (Cout, 1)       bias (lane-broadcast)
    # o_ref       : (1, Cout, H*W)  lane-dense output block
    # patches_ref : (9*Cin, H*W)    VMEM im2col scratch
    F = H * W
    cin = x_ref.shape[1]
    x = x_ref[0]                                             # (Cin, F)

    # Column-boundary masks; the flat zero-fill in _shift_flat handles the
    # row (H) boundary exactly, so only kw = +/-1 taps need masking.
    col = lax.broadcasted_iota(jnp.int32, (1, F), 1) % W
    mask_pos = (col != (W - 1)).astype(x.dtype)              # tap reads w+1
    mask_neg = (col != 0).astype(x.dtype)                    # tap reads w-1

    # Build the im2col buffer: 9 shifted copies of the flattened image.
    t = 0
    for dh in (-1, 0, 1):
        for dw in (-1, 0, 1):
            s = _shift_flat(x, dh * W + dw)
            if dw == 1:
                s = s * mask_pos
            elif dw == -1:
                s = s * mask_neg
            patches_ref[t * cin:(t + 1) * cin, :] = s
            t += 1

    # Single MXU matmul: (Cout, 9*Cin) @ (9*Cin, F) -> (Cout, F), f32 accum.
    acc = lax.dot_general(
        w_ref[...], patches_ref[...],
        dimension_numbers=(((1,), (0,)), ((), ())),
        preferred_element_type=jnp.float32)
    acc = acc + b_ref[...]                                   # bias, lane-broadcast
    acc = jnp.maximum(acc, 0.0)                              # ReLU (act=True)
    # TODO(synk): InnerBatchNorm branch (norm=True) not implemented; module
    # default path is conv + ReLU only.
    o_ref[0] = acc.astype(o_ref.dtype)


@jax.jit
def equivariant_block(x_nchw, w_hwio, bias):
    """conv2d(k=3, s=1, p=1) + bias + ReLU, matching the PyTorch forward (NCHW)."""
    N, Cin, H, W = x_nchw.shape
    Cout = w_hwio.shape[-1]
    F = H * W

    # Free contiguous reshape (no pad, no layout transpose of activations).
    x_flat = x_nchw.reshape(N, Cin, F)
    # Tiny, once-per-call parameter reshape: (kh,kw,ci,co) -> (co, tap*Cin+ci).
    w_mat = jnp.transpose(w_hwio, (3, 0, 1, 2)).reshape(Cout, 9 * Cin)
    b_col = bias.reshape(Cout, 1)

    kernel = functools.partial(conv3x3_relu_kernel, H=H, W=W)

    out_flat = pl.pallas_call(
        kernel,
        out_shape=jax.ShapeDtypeStruct((N, Cout, F), x_nchw.dtype),
        grid_spec=pltpu.PrefetchScalarGridSpec(
            num_scalar_prefetch=0,
            grid=(N,),
            in_specs=[
                pl.BlockSpec((1, Cin, F), lambda n: (n, 0, 0)),
                pl.BlockSpec((Cout, 9 * Cin), lambda n: (0, 0)),
                pl.BlockSpec((Cout, 1), lambda n: (0, 0)),
            ],
            out_specs=pl.BlockSpec((1, Cout, F), lambda n: (n, 0, 0)),
            scratch_shapes=[pltpu.VMEM((9 * Cin, F), jnp.float32)],
        ),
        compiler_params=pltpu.CompilerParams(
            dimension_semantics=("parallel",)),
    )(x_flat, w_mat, b_col)

    return out_flat.reshape(N, Cout, H, W)                   # free collapse


def make_params(key, cin, cout, ksize=3):
    """Deterministic synthetic R2Conv parameters.

    Emulates the steerable-basis constraint by group-averaging a He-initialized
    filter over the C4 rotation group (valid for trivial in/out field types),
    yielding a genuinely C4-equivariant convolution filter.
    """
    kw_key, b_key = jax.random.split(key)
    fan_in = cin * ksize * ksize
    w = jax.random.normal(kw_key, (ksize, ksize, cin, cout), jnp.float32)
    w = w * jnp.sqrt(2.0 / fan_in)
    w = jnp.mean(
        jnp.stack([jnp.rot90(w, k, axes=(0, 1)) for k in range(4)]), axis=0)
    b = 0.01 * jax.random.normal(b_key, (cout,), jnp.float32)
    return w, b


if __name__ == "__main__":
    # Small shapes: batch=2, in_channels=4, out_channels=8, spatial=16x16 (NCHW).
    N, Cin, Cout, H, W = 2, 4, 8, 16, 16

    key = jax.random.PRNGKey(0)
    x_key, p_key = jax.random.split(key)
    x = jax.random.normal(x_key, (N, Cin, H, W), jnp.float32)
    w_hwio, bias = make_params(p_key, Cin, Cout)

    out = jax.block_until_ready(equivariant_block(x, w_hwio, bias))

    # Pure-JAX reference (same semantics as F.conv2d + bias + ReLU in NCHW).
    ref = lax.conv_general_dilated(
        x, jnp.transpose(w_hwio, (3, 2, 0, 1)),               # OIHW
        window_strides=(1, 1), padding=((1, 1), (1, 1)),
        dimension_numbers=("NCHW", "OIHW", "NCHW"))
    ref = jnp.maximum(ref + bias[None, :, None, None], 0.0)

    np.testing.assert_allclose(np.asarray(out), np.asarray(ref),
                               rtol=1e-5, atol=1e-5)
    assert out.shape == (N, Cout, H, W)
    print("KERNEL_OK")
</pallas_src>

<mosaic_0001>
module attributes {stable_mosaic.version = 11 : i64} {
  func.func @conv3x3_relu_kernel(%arg0: i32, %arg1: memref<1x4x256xf32, #tpu.memory_space<vmem>>, %arg2: memref<8x36xf32, #tpu.memory_space<vmem>>, %arg3: memref<8x1xf32, #tpu.memory_space<vmem>>, %arg4: memref<1x8x256xf32, #tpu.memory_space<vmem>>, %arg5: memref<36x256xf32, #tpu.memory_space<vmem>>) attributes {dimension_semantics = [#tpu.dimension_semantics<parallel>], iteration_bounds = array<i64: 2>, scalar_prefetch = 0 : i64, scratch_operands = 1 : i64, tpu.core_type = #tpu.core_type<tc>, window_params = [{transform_indices = @transform_0, window_bounds = array<i64: 1, 4, 256>}, {pipeline_mode = #tpu.pipeline_mode<synchronous>, transform_indices = @transform_1, window_bounds = array<i64: 8, 36>}, {pipeline_mode = #tpu.pipeline_mode<synchronous>, transform_indices = @transform_2, window_bounds = array<i64: 8, 1>}, {transform_indices = @transform_3, window_bounds = array<i64: 1, 8, 256>}]} {
    %c0 = arith.constant 0 : index
    %c0_0 = arith.constant 0 : index
    %c0_1 = arith.constant 0 : index
    %0 = vector.load %arg1[%c0, %c0_0, %c0_1] : memref<1x4x256xf32, #tpu.memory_space<vmem>>, vector<1x4x256xf32>
    %1 = vector.shape_cast %0 : vector<1x4x256xf32> to vector<4x256xf32>
    %2 = tpu.iota {dimensions = array<i32: 1>} : vector<1x256xi32>
    %c16_i32 = arith.constant 16 : i32
    %c0_i32 = arith.constant 0 : i32
    %3 = arith.cmpi eq, %c16_i32, %c0_i32 : i32
    %c1_i32 = arith.constant 1 : i32
    %4 = arith.select %3, %c1_i32, %c16_i32 : i32
    %5 = vector.broadcast %4 : i32 to vector<1x256xi32>
    %6 = arith.remsi %2, %5 : vector<1x256xi32>
    %c0_i32_2 = arith.constant 0 : i32
    %7 = vector.broadcast %c0_i32_2 : i32 to vector<1x256xi32>
    %8 = arith.cmpi ne, %6, %7 : vector<1x256xi32>
    %c0_i32_3 = arith.constant 0 : i32
    %9 = vector.broadcast %c0_i32_3 : i32 to vector<1x256xi32>
    %10 = arith.cmpi slt, %6, %9 : vector<1x256xi32>
    %c0_i32_4 = arith.constant 0 : i32
    %11 = arith.cmpi slt, %4, %c0_i32_4 : i32
    %12 = vector.broadcast %11 : i1 to vector<1x256xi1>
    %13 = vector.broadcast %12 : vector<1x256xi1> to vector<1x256xi1>
    %14 = arith.xori %10, %13 : vector<1x256xi1>
    %15 = arith.andi %14, %8 : vector<1x256xi1>
    %16 = vector.broadcast %4 : i32 to vector<1x256xi32>
    %17 = arith.addi %6, %16 : vector<1x256xi32>
    %18 = arith.select %15, %17, %6 : vector<1x256xi1>, vector<1x256xi32>
    %c15_i32 = arith.constant 15 : i32
    %19 = vector.broadcast %c15_i32 : i32 to vector<1x256xi32>
    %20 = arith.cmpi ne, %18, %19 : vector<1x256xi32>
    %21 = arith.extui %20 : vector<1x256xi1> to vector<1x256xi32>
    %22 = arith.sitofp %21 : vector<1x256xi32> to vector<1x256xf32>
    %c0_i32_5 = arith.constant 0 : i32
    %23 = vector.broadcast %c0_i32_5 : i32 to vector<1x256xi32>
    %24 = arith.cmpi ne, %18, %23 : vector<1x256xi32>
    %25 = arith.extui %24 : vector<1x256xi1> to vector<1x256xi32>
    %26 = arith.sitofp %25 : vector<1x256xi32> to vector<1x256xf32>
    %cst = arith.constant 0.000000e+00 : f32
    %27 = vector.broadcast %cst : f32 to vector<4x17xf32>
    %28 = vector.extract_strided_slice %1 {offsets = [0, 0], sizes = [4, 239], strides = [1, 1]} : vector<4x256xf32> to vector<4x239xf32>
    %29 = tpu.concatenate %27, %28 in 1 : vector<4x17xf32>, vector<4x239xf32> -> vector<4x256xf32>
    %30 = vector.broadcast %26 : vector<1x256xf32> to vector<4x256xf32>
    %31 = arith.mulf %29, %30 : vector<4x256xf32>
    %c0_6 = arith.constant 0 : index
    %c0_7 = arith.constant 0 : index
    %32 = vector.load %arg5[%c0_6, %c0_7] : memref<36x256xf32, #tpu.memory_space<vmem>>, vector<4x256xf32>
    tpu.vector_store %arg5[%c0_6, %c0_7], %31 {strides = array<i32>} : memref<36x256xf32, #tpu.memory_space<vmem>>, vector<4x256xf32>,
    %cst_8 = arith.constant 0.000000e+00 : f32
    %33 = vector.broadcast %cst_8 : f32 to vector<4x16xf32>
    %34 = vector.extract_strided_slice %1 {offsets = [0, 0], sizes = [4, 240], strides = [1, 1]} : vector<4x256xf32> to vector<4x240xf32>
    %35 = tpu.concatenate %33, %34 in 1 : vector<4x16xf32>, vector<4x240xf32> -> vector<4x256xf32>
    %c4 = arith.constant 4 : index
    %c0_9 = arith.constant 0 : index
    %36 = vector.load %arg5[%c4, %c0_9] : memref<36x256xf32, #tpu.memory_space<vmem>>, vector<4x256xf32>
    tpu.vector_store %arg5[%c4, %c0_9], %35 {strides = array<i32>} : memref<36x256xf32, #tpu.memory_space<vmem>>, vector<4x256xf32>,
    %cst_10 = arith.constant 0.000000e+00 : f32
    %37 = vector.broadcast %cst_10 : f32 to vector<4x15xf32>
    %38 = vector.extract_strided_slice %1 {offsets = [0, 0], sizes = [4, 241], strides = [1, 1]} : vector<4x256xf32> to vector<4x241xf32>
    %39 = tpu.concatenate %37, %38 in 1 : vector<4x15xf32>, vector<4x241xf32> -> vector<4x256xf32>
    %40 = vector.broadcast %22 : vector<1x256xf32> to vector<4x256xf32>
    %41 = arith.mulf %39, %40 : vector<4x256xf32>
    %c8 = arith.constant 8 : index
    %c0_11 = arith.constant 0 : index
    %42 = vector.load %arg5[%c8, %c0_11] : memref<36x256xf32, #tpu.memory_space<vmem>>, vector<4x256xf32>
    tpu.vector_store %arg5[%c8, %c0_11], %41 {strides = array<i32>} : memref<36x256xf32, #tpu.memory_space<vmem>>, vector<4x256xf32>,
    %cst_12 = arith.constant 0.000000e+00 : f32
    %43 = vector.broadcast %cst_12 : f32 to vector<4x1xf32>
    %44 = vector.extract_strided_slice %1 {offsets = [0, 0], sizes = [4, 255], strides = [1, 1]} : vector<4x256xf32> to vector<4x255xf32>
    %45 = tpu.concatenate %43, %44 in 1 : vector<4x1xf32>, vector<4x255xf32> -> vector<4x256xf32>
    %46 = vector.broadcast %26 : vector<1x256xf32> to vector<4x256xf32>
    %47 = arith.mulf %45, %46 : vector<4x256xf32>
    %c12 = arith.constant 12 : index
    %c0_13 = arith.constant 0 : index
    %48 = vector.load %arg5[%c12, %c0_13] : memref<36x256xf32, #tpu.memory_space<vmem>>, vector<4x256xf32>
    tpu.vector_store %arg5[%c12, %c0_13], %47 {strides = array<i32>} : memref<36x256xf32, #tpu.memory_space<vmem>>, vector<4x256xf32>,
    %c16 = arith.constant 16 : index
    %c0_14 = arith.constant 0 : index
    %49 = vector.load %arg5[%c16, %c0_14] : memref<36x256xf32, #tpu.memory_space<vmem>>, vector<4x256xf32>
    tpu.vector_store %arg5[%c16, %c0_14], %1 {strides = array<i32>} : memref<36x256xf32, #tpu.memory_space<vmem>>, vector<4x256xf32>,
    %50 = vector.extract_strided_slice %1 {offsets = [0, 1], sizes = [4, 255], strides = [1, 1]} : vector<4x256xf32> to vector<4x255xf32>
    %cst_15 = arith.constant 0.000000e+00 : f32
    %51 = vector.broadcast %cst_15 : f32 to vector<4x1xf32>
    %52 = tpu.concatenate %50, %51 in 1 : vector<4x255xf32>, vector<4x1xf32> -> vector<4x256xf32>
    %53 = vector.broadcast %22 : vector<1x256xf32> to vector<4x256xf32>
    %54 = arith.mulf %52, %53 : vector<4x256xf32>
    %c20 = arith.constant 20 : index
    %c0_16 = arith.constant 0 : index
    %55 = vector.load %arg5[%c20, %c0_16] : memref<36x256xf32, #tpu.memory_space<vmem>>, vector<4x256xf32>
    tpu.vector_store %arg5[%c20, %c0_16], %54 {strides = array<i32>} : memref<36x256xf32, #tpu.memory_space<vmem>>, vector<4x256xf32>,
    %56 = vector.extract_strided_slice %1 {offsets = [0, 15], sizes = [4, 241], strides = [1, 1]} : vector<4x256xf32> to vector<4x241xf32>
    %cst_17 = arith.constant 0.000000e+00 : f32
    %57 = vector.broadcast %cst_17 : f32 to vector<4x15xf32>
    %58 = tpu.concatenate %56, %57 in 1 : vector<4x241xf32>, vector<4x15xf32> -> vector<4x256xf32>
    %59 = vector.broadcast %26 : vector<1x256xf32> to vector<4x256xf32>
    %60 = arith.mulf %58, %59 : vector<4x256xf32>
    %c24 = arith.constant 24 : index
    %c0_18 = arith.constant 0 : index
    %61 = vector.load %arg5[%c24, %c0_18] : memref<36x256xf32, #tpu.memory_space<vmem>>, vector<4x256xf32>
    tpu.vector_store %arg5[%c24, %c0_18], %60 {strides = array<i32>} : memref<36x256xf32, #tpu.memory_space<vmem>>, vector<4x256xf32>,
    %62 = vector.extract_strided_slice %1 {offsets = [0, 16], sizes = [4, 240], strides = [1, 1]} : vector<4x256xf32> to vector<4x240xf32>
    %cst_19 = arith.constant 0.000000e+00 : f32
    %63 = vector.broadcast %cst_19 : f32 to vector<4x16xf32>
    %64 = tpu.concatenate %62, %63 in 1 : vector<4x240xf32>, vector<4x16xf32> -> vector<4x256xf32>
    %c28 = arith.constant 28 : index
    %c0_20 = arith.constant 0 : index
    %65 = vector.load %arg5[%c28, %c0_20] : memref<36x256xf32, #tpu.memory_space<vmem>>, vector<4x256xf32>
    tpu.vector_store %arg5[%c28, %c0_20], %64 {strides = array<i32>} : memref<36x256xf32, #tpu.memory_space<vmem>>, vector<4x256xf32>,
    %66 = vector.extract_strided_slice %1 {offsets = [0, 17], sizes = [4, 239], strides = [1, 1]} : vector<4x256xf32> to vector<4x239xf32>
    %cst_21 = arith.constant 0.000000e+00 : f32
    %67 = vector.broadcast %cst_21 : f32 to vector<4x17xf32>
    %68 = tpu.concatenate %66, %67 in 1 : vector<4x239xf32>, vector<4x17xf32> -> vector<4x256xf32>
    %69 = vector.broadcast %22 : vector<1x256xf32> to vector<4x256xf32>
    %70 = arith.mulf %68, %69 : vector<4x256xf32>
    %c32 = arith.constant 32 : index
    %c0_22 = arith.constant 0 : index
    %71 = vector.load %arg5[%c32, %c0_22] : memref<36x256xf32, #tpu.memory_space<vmem>>, vector<4x256xf32>
    tpu.vector_store %arg5[%c32, %c0_22], %70 {strides = array<i32>} : memref<36x256xf32, #tpu.memory_space<vmem>>, vector<4x256xf32>,
    %c0_23 = arith.constant 0 : index
    %c0_24 = arith.constant 0 : index
    %72 = vector.load %arg2[%c0_23, %c0_24] : memref<8x36xf32, #tpu.memory_space<vmem>>, vector<8x36xf32>
    %c0_25 = arith.constant 0 : index
    %c0_26 = arith.constant 0 : index
    %73 = vector.load %arg5[%c0_25, %c0_26] : memref<36x256xf32, #tpu.memory_space<vmem>>, vector<36x256xf32>
    %cst_27 = arith.constant dense<0.000000e+00> : vector<8x256xf32>
    %74 = tpu.matmul %72, %73, %cst_27 {dimension_numbers = #tpu.dot_dimension_numbers<[1], [0], [0], [1], [0, 0, 1, 1], [], []>} : vector<8x36xf32>, vector<36x256xf32>, vector<8x256xf32> -> vector<8x256xf32>
    %c0_28 = arith.constant 0 : index
    %c0_29 = arith.constant 0 : index
    %75 = vector.load %arg3[%c0_28, %c0_29] : memref<8x1xf32, #tpu.memory_space<vmem>>, vector<8x1xf32>
    %76 = vector.broadcast %75 : vector<8x1xf32> to vector<8x256xf32>
    %77 = arith.addf %74, %76 : vector<8x256xf32>
    %cst_30 = arith.constant 0.000000e+00 : f32
    %78 = vector.broadcast %cst_30 : f32 to vector<8x256xf32>
    %79 = arith.maximumf %77, %78 : vector<8x256xf32>
    %c0_31 = arith.constant 0 : index
    %c0_32 = arith.constant 0 : index
    %c0_33 = arith.constant 0 : index
    %80 = vector.load %arg4[%c0_31, %c0_32, %c0_33] : memref<1x8x256xf32, #tpu.memory_space<vmem>>, vector<1x8x256xf32>
    %81 = vector.shape_cast %80 : vector<1x8x256xf32> to vector<8x256xf32>
    %82 = vector.shape_cast %79 : vector<8x256xf32> to vector<1x8x256xf32>
    tpu.vector_store %arg4[%c0_31, %c0_32, %c0_33], %82 {strides = array<i32>} : memref<1x8x256xf32, #tpu.memory_space<vmem>>, vector<1x8x256xf32>,
    return
  }
  func.func @transform_0(%arg0: i32) -> (i32, i32, i32) {
    %c0_i32 = arith.constant 0 : i32
    %c0_i32_0 = arith.constant 0 : i32
    %c0_i32_1 = arith.constant 0 : i32
    return %arg0, %c0_i32, %c0_i32_0 : i32, i32, i32
  }
  func.func @transform_1(%arg0: i32) -> (i32, i32) {
    %c0_i32 = arith.constant 0 : i32
    %c0_i32_0 = arith.constant 0 : i32
    %c0_i32_1 = arith.constant 0 : i32
    return %c0_i32, %c0_i32_0 : i32, i32
  }
  func.func @transform_2(%arg0: i32) -> (i32, i32) {
    %c0_i32 = arith.constant 0 : i32
    %c0_i32_0 = arith.constant 0 : i32
    %c0_i32_1 = arith.constant 0 : i32
    return %c0_i32, %c0_i32_0 : i32, i32
  }
  func.func @transform_3(%arg0: i32) -> (i32, i32, i32) {
    %c0_i32 = arith.constant 0 : i32
    %c0_i32_0 = arith.constant 0 : i32
    %c0_i32_1 = arith.constant 0 : i32
    return %arg0, %c0_i32, %c0_i32_0 : i32, i32, i32
  }
}

</mosaic_0001>

<llo_original>
// kernel: equivariant_block.1
$region0: #{equivariant_block.1}
  #allocation0 [shape = 'u32[]', space=smem, size = 0x4, offset = 0x4, fixed_abs, tag = 'smem constant byte address 0x4 - core index']
  #allocation1 [shape = 'u32[144,128]{1,0:T(1,128)}', space=vmem, size = 0x12000, scoped, tag = 'internal scratch']
  #allocation2 [shape = 'f32[36,256]{1,0:T(8,128)}', space=vmem, size = 0xa000, scoped, tag = 'scratch operand']
  %s0 = inlined_call_operand.vmem [shape: f32[2,4,256], index: 0, kind: input, shape index: {}]
  %s1 = inlined_call_operand.vmem [shape: f32[8,36], index: 1, kind: input, shape index: {}]
  %s2 = inlined_call_operand.vmem [shape: f32[8,1], index: 2, kind: input, shape index: {}]
  %s3 = inlined_call_operand.vmem [shape: f32[2,8,256], index: 3, kind: output, shape index: {}]
  %s4 = sld [smem:[#allocation0]]
  $region45: #{equivariant_block.1} parent=0
    _
  %s6 = ssub.s32 1, %s4
  %s7 = scalar_select 0, %s6, %s4
  loop: start=0, step=1, limit=4
  $region2: #{equivariant_block.1} parent=0 // loop_pre_header
    _
  $region3: #{equivariant_block.1} parent=0 // loop_header
    %s9 = sphi 0, %s13
    %p10 = scmp.ge.s32.totalorder %s9, 4
    %s19 = sphi 0, %s21
    %s22 = sphi 0, %s19
    %s23 = sphi 0, %s22
    %s39 = sphi 0, %s23
    %s43 = sphi 0, %s43
    %s45 = sphi 0, %s43
    %s46 = sphi 0, %s45
    %s60 = sphi 0, %s46
    %s64 = sphi 0, %s64
    %s66 = sphi 0, %s64
    %s67 = sphi 0, %s66
    %s81 = sphi 0, %s67
    %s87 = sphi 0, %s89
    %s90 = sphi 0, %s87
    %s91 = sphi 0, %s90
    %s107 = sphi 0, %s91
  $region4: #{equivariant_block.1} parent=0 // loop_header_branch
    %12 = sbr.rel (%p10) target = $region8
  $region5: #{equivariant_block.1} parent=0 // loop_body
    %s14 = ssub.s32 %s9, 1
    %s15 = ssub.s32 %s9, 2
    %s16 = sadd.s32 %s9, 1
    %s17 = ssub.s32 %s9, %s16
    %p18 = scmp.eq.s32.totalorder %s17, 0
    %s20 = sadd.s32 %s19, 1
    %s21 = scalar_select %p18, %s19, %s20
    %p24 = pneg %p18
    %p25 = scmp.eq.s32.totalorder %s9, 1
    %p26 = por %p24, %p25
    %p27 = scmp.ne.s32.totalorder %s19, %s22
    %p28 = scmp.eq.s32.totalorder %s9, 0
    %p29 = por %p27, %p28
    %p30 = scmp.ne.s32.totalorder %s19, %s22
    %p31 = scmp.eq.s32.totalorder %s14, 1
    %p32 = por %p30, %p31
    %p33 = scmp.ne.s32.totalorder %s22, %s23
    %p34 = scmp.eq.s32.totalorder %s14, 0
    %p35 = por %p33, %p34
    %p36 = scmp.ne.s32.totalorder %s22, %s23
    %p37 = scmp.eq.s32.totalorder %s15, 1
    %p38 = por %p36, %p37
    %p40 = scmp.ne.s32.totalorder %s23, %s39
    %p41 = scmp.eq.s32.totalorder %s15, 0
    %p42 = por %p40, %p41
    %s44 = sadd.s32 %s43, 1
    %p47 = scmp.eq.s32.totalorder %s9, 1
    %p48 = scmp.ne.s32.totalorder %s43, %s45
    %p49 = scmp.eq.s32.totalorder %s9, 0
    %p50 = por %p48, %p49
    %p51 = scmp.ne.s32.totalorder %s43, %s45
    %p52 = scmp.eq.s32.totalorder %s14, 1
    %p53 = por %p51, %p52
    %p54 = scmp.ne.s32.totalorder %s45, %s46
    %p55 = scmp.eq.s32.totalorder %s14, 0
    %p56 = por %p54, %p55
    %p57 = scmp.ne.s32.totalorder %s45, %s46
    %p58 = scmp.eq.s32.totalorder %s15, 1
    %p59 = por %p57, %p58
    %p61 = scmp.ne.s32.totalorder %s46, %s60
    %p62 = scmp.eq.s32.totalorder %s15, 0
    %p63 = por %p61, %p62
    %s65 = sadd.s32 %s64, 1
    %p68 = scmp.eq.s32.totalorder %s9, 1
    %p69 = scmp.ne.s32.totalorder %s64, %s66
    %p70 = scmp.eq.s32.totalorder %s9, 0
    %p71 = por %p69, %p70
    %p72 = scmp.ne.s32.totalorder %s64, %s66
    %p73 = scmp.eq.s32.totalorder %s14, 1
    %p74 = por %p72, %p73
    %p75 = scmp.ne.s32.totalorder %s66, %s67
    %p76 = scmp.eq.s32.totalorder %s14, 0
    %p77 = por %p75, %p76
    %p78 = scmp.ne.s32.totalorder %s66, %s67
    %p79 = scmp.eq.s32.totalorder %s15, 1
    %p80 = por %p78, %p79
    %p82 = scmp.ne.s32.totalorder %s67, %s81
    %p83 = scmp.eq.s32.totalorder %s15, 0
    %p84 = por %p82, %p83
    %s85 = ssub.s32 %s9, %s16
    %p86 = scmp.eq.s32.totalorder %s85, 0
    %s88 = sadd.s32 %s87, 1
    %s89 = scalar_select %p86, %s87, %s88
    %p92 = pneg %p86
    %p93 = scmp.eq.s32.totalorder %s9, 1
    %p94 = por %p92, %p93
    %p95 = scmp.ne.s32.totalorder %s87, %s90
    %p96 = scmp.eq.s32.totalorder %s9, 0
    %p97 = por %p95, %p96
    %p98 = scmp.ne.s32.totalorder %s87, %s90
    %p99 = scmp.eq.s32.totalorder %s14, 1
    %p100 = por %p98, %p99
    %p101 = scmp.ne.s32.totalorder %s90, %s91
    %p102 = scmp.eq.s32.totalorder %s14, 0
    %p103 = por %p101, %p102
    %p104 = scmp.ne.s32.totalorder %s90, %s91
    %p105 = scmp.eq.s32.totalorder %s15, 1
    %p106 = por %p104, %p105
    %p108 = scmp.ne.s32.totalorder %s91, %s107
    %p109 = scmp.eq.s32.totalorder %s15, 0
    %p110 = por %p108, %p109
    %p111 = scmp.le.s32.totalorder 1, %s9
    %p112 = scmp.lt.s32.totalorder %s9, 3
    %p113 = pnand %p111, %p112
    %p114 = pneg %p113
    // Predicated region
    $region9: #{equivariant_block.1} parent=5 // pred_check
      _
    $region10: #{equivariant_block.1} parent=5 // pred_check_branch
      %116 = sbr.rel (%p113) target = $region12
    $region11: #{equivariant_block.1} parent=5 // pred_region
      %s117 = ssub.s32 %s9, 1
      // Predicated region
      $region13: #{equivariant_block.1} parent=11 // pred_check
        %p118 = pneg %p56
      $region14: #{equivariant_block.1} parent=11 // pred_check_branch
        %120 = sbr.rel (%p118) target = $region16
      $region15: #{equivariant_block.1} parent=11 // pred_region
        _
      $region16: #{equivariant_block.1} parent=11 // pred_fallthru
        _
      // Predicated region
      $region17: #{equivariant_block.1} parent=11 // pred_check
        %p121 = pneg %p77
      $region18: #{equivariant_block.1} parent=11 // pred_check_branch
        %123 = sbr.rel (%p121) target = $region20
      $region19: #{equivariant_block.1} parent=11 // pred_region
        _
      $region20: #{equivariant_block.1} parent=11 // pred_fallthru
        _
    $region12: #{equivariant_block.1} parent=5 // pred_fallthru
      _
    %p124 = scmp.lt.s32.totalorder %s9, 2
    // Predicated region
    $region21: #{equivariant_block.1} parent=5 // pred_check
      %p125 = pneg %p124
    $region22: #{equivariant_block.1} parent=5 // pred_check_branch
      %127 = sbr.rel (%p125) target = $region24
    $region23: #{equivariant_block.1} parent=5 // pred_region
      // Predicated region
      $region25: #{equivariant_block.1} parent=23 // pred_check
        %p128 = pneg %p29
      $region26: #{equivariant_block.1} parent=23 // pred_check_branch
        %130 = sbr.rel (%p128) target = $region28
      $region27: #{equivariant_block.1} parent=23 // pred_region
        %p131 = scmp.lt.s32.totalorder %s9, 1
        %s132 = scalar_select %p131, %s9, 1
        %s133 = smul.addr %s132, 2
        %s134 = smul.addr %s133, 4
        %s135 = scalar_lea.vmem %s0, %s134
      $region28: #{equivariant_block.1} parent=23 // pred_fallthru
        _
    $region24: #{equivariant_block.1} parent=5 // pred_fallthru
      _
    %p136 = scmp.le.s32.totalorder 1, %s9
    %p137 = scmp.lt.s32.totalorder %s9, 3
    %p138 = pnand %p136, %p137
    %p139 = pneg %p138
    // Predicated region
    $region29: #{equivariant_block.1} parent=5 // pred_check
      _
    $region30: #{equivariant_block.1} parent=5 // pred_check_branch
      %141 = sbr.rel (%p138) target = $region32
    $region31: #{equivariant_block.1} parent=5 // pred_region
      %s142 = ssub.s32 %s9, 1
      %p143 = scmp.lt.s32.totalorder %s14, 1
      %s144 = scalar_select %p143, %s14, 1
      %s145 = smul.addr %s144, 2
      %s146 = smul.addr %s145, 4
      %s147 = scalar_lea.vmem %s0, %s146
      %p148 = pneg %p35
      %p149 = pneg %p32
      %p150 = pneg %p56
      %p151 = pneg %p53
      %p152 = pneg %p77
      %p153 = pneg %p74
      %p154 = pneg %p103
      %p155 = pneg %p100
      %p156 = scmp.lt.s32.totalorder %s14, 1
      %s157 = scalar_select %p156, %s14, 1
      %s158 = smul.addr %s157, 2
      %s159 = smul.addr %s158, 8
      %s160 = scalar_lea.vmem %s3, %s159
      %p161 = scmp.lt.s32.totalorder %s14, 1
      %s162 = scalar_select %p161, %s14, 1
      %s163 = smul.addr %s162, 2
      %s164 = smul.addr %s163, 4
      %s165 = scalar_lea.vmem %s0, %s164
      %p166 = scmp.lt.s32.totalorder %s14, 1
      %s167 = scalar_select %p166, %s14, 1
      %s168 = smul.addr %s167, 2
      %s169 = smul.addr %s168, 8
      %s170 = scalar_lea.vmem %s3, %s169
      %v171 = vld [vmem:[%s165] sm:$0xff]
      %v172 = vlaneseq
      %v173 = vand.u32 %v172, 127
      %v174 = vadd.s32 %v173, 128
      %vm175 = vcmp.lt.s32.totalorder %v173, 0
      %v176 = vsub.s32 0, %v173
      %v177 = vsel %vm175, %v176, %v173
      %v178 = vshrl.u32 %v177, 4
      %v179 = vand.u32 %v177, 15
      %v180 = vsub.s32 0, %v179
      %v181 = vsel %vm175, %v180, %v179
      %vm182 = vcmp.lt.s32.totalorder %v174, 0
      %v183 = vsub.s32 0, %v174
      %v184 = vsel %vm182, %v183, %v174
      %v185 = vshrl.u32 %v184, 4
      %v186 = vand.u32 %v184, 15
      %v187 = vsub.s32 0, %v186
      %v188 = vsel %vm182, %v187, %v186
      %vm189 = vcmp.ne.s32.totalorder %v181, 0
      %vm190 = vcmp.ne.s32.totalorder %v188, 0
      %vm191 = vcmp.lt.s32.totalorder %v181, 0
      %vm192 = vcmp.lt.s32.totalorder %v188, 0
      %vm193 = vmand %vm191, %vm189
      %vm194 = vmand %vm192, %vm190
      %v195 = vadd.s32 %v181, 16
      %v196 = vadd.s32 %v188, 16
      %v197 = vsel %vm193, %v195, %v181
      %v198 = vsel %vm194, %v196, %v188
      %vm199 = vcmp.ne.s32.totalorder %v197, 15
      %vm200 = vcmp.ne.s32.totalorder %v198, 15
      %v201 = vsel %vm199, 1, 0
      %v202 = vsel %vm200, 1, 0
      %v203 = vcvt.s32.f32 %v201
      %v204 = vcvt.s32.f32 %v202
      %vm205 = vcmp.ne.s32.totalorder %v197, 0
      %vm206 = vcmp.ne.s32.totalorder %v198, 0
      %v207 = vsel %vm205, 1, 0
      %v208 = vsel %vm206, 1, 0
      %v209 = vcvt.s32.f32 %v207
      %v210 = vcvt.s32.f32 %v208
      %v212 = vcombine.high %v171, %v171
      %213 = vrot.lane.b32.xlu0 %v171, 17
      %v214 = vpop.permute.xlu0 %213
      %215 = vrot.lane.b32.xlu0 %v212, 17
      %v216 = vpop.permute.xlu0 %215
      %vm217 = vcmask 138240
      %v218 = vsel %vm217, %v214, %v216
      %v221 = vsel %vm217, 0.0, %v214
      %v222 = vmul.f32 %v221, %v209
      %v223 = vmul.f32 %v218, %v210
      %224 = vst [vmem:[#allocation2] sm:$0xf] %v222
      %225 = vst [vmem:[#allocation2 + $0x8] sm:$0xf] %v223
      %226 = vrot.lane.b32.xlu0 %v171, 16
      %v227 = vpop.permute.xlu0 %226
      %228 = vrot.lane.b32.xlu0 %v212, 16
      %v229 = vpop.permute.xlu0 %228
      %vm230 = vcmask 130048
      %v231 = vsel %vm230, %v227, %v229
      %v233 = vsel %vm230, 0.0, %v227
      %v235 = vrot.slane %v233, 4
      %v236 = vrot.slane %v231, 4
      %239 = vst [vmem:[#allocation2] sm:$0xf0] %v235
      %240 = vst [vmem:[#allocation2 + $0x8] sm:$0xf0] %v236
      %241 = vrot.lane.b32.xlu0 %v171, 15
      %v242 = vpop.permute.xlu0 %241
      %243 = vrot.lane.b32.xlu0 %v212, 15
      %v244 = vpop.permute.xlu0 %243
      %vm245 = vcmask 121856
      %v246 = vsel %vm245, %v242, %v244
      %v249 = vsel %vm245, 0.0, %v242
      %v250 = vmul.f32 %v249, %v203
      %v251 = vmul.f32 %v246, %v204
      %252 = vst [vmem:[#allocation2 + $0x10] sm:$0xf] %v250
      %253 = vst [vmem:[#allocation2 + $0x18] sm:$0xf] %v251
      %254 = vrot.lane.b32.xlu0 %v171, 1
      %v255 = vpop.permute.xlu0 %254
      %256 = vrot.lane.b32.xlu0 %v212, 1
      %v257 = vpop.permute.xlu0 %256
      %vm258 = vcmask 7168
      %v259 = vsel %vm258, %v255, %v257
      %v262 = vsel %vm258, 0.0, %v255
      %v263 = vmul.f32 %v262, %v209
      %v264 = vmul.f32 %v259, %v210
      %v267 = vrot.slane %v263, 4
      %v268 = vrot.slane %v264, 4
      %271 = vst [vmem:[#allocation2 + $0x10] sm:$0xf0] %v267
      %272 = vst [vmem:[#allocation2 + $0x18] sm:$0xf0] %v268
      %274 = vst [vmem:[#allocation2 + $0x20] sm:$0xf] %v171
      %275 = vst [vmem:[#allocation2 + $0x28] sm:$0xf] %v212
      %276 = vrot.lane.b32.xlu0 %v171, 127
      %v277 = vpop.permute.xlu0 %276
      %278 = vrot.lane.b32.xlu0 %v212, 127
      %v279 = vpop.permute.xlu0 %278
      %vm280 = vcmask 1039360
      %v281 = vsel %vm280, %v277, %v279
      %v284 = vsel %vm280, %v279, 0.0
      %v285 = vmul.f32 %v281, %v203
      %v286 = vmul.f32 %v284, %v204
      %v289 = vrot.slane %v285, 4
      %v290 = vrot.slane %v286, 4
      %293 = vst [vmem:[#allocation2 + $0x20] sm:$0xf0] %v289
      %294 = vst [vmem:[#allocation2 + $0x28] sm:$0xf0] %v290
      %295 = vrot.lane.b32.xlu0 %v171, 113
      %v296 = vpop.permute.xlu0 %295
      %297 = vrot.lane.b32.xlu0 %v212, 113
      %v298 = vpop.permute.xlu0 %297
      %vm299 = vcmask 924672
      %v300 = vsel %vm299, %v296, %v298
      %v303 = vsel %vm299, %v298, 0.0
      %v304 = vmul.f32 %v300, %v209
      %v305 = vmul.f32 %v303, %v210
      %306 = vst [vmem:[#allocation2 + $0x30] sm:$0xf] %v304
      %307 = vst [vmem:[#allocation2 + $0x38] sm:$0xf] %v305
      %308 = vrot.lane.b32.xlu0 %v171, 112
      %v309 = vpop.permute.xlu0 %308
      %310 = vrot.lane.b32.xlu0 %v212, 112
      %v311 = vpop.permute.xlu0 %310
      %vm312 = vcmask 916480
      %v313 = vsel %vm312, %v309, %v311
      %v315 = vsel %vm312, %v311, 0.0
      %v317 = vrot.slane %v313, 4
      %v318 = vrot.slane %v315, 4
      %321 = vst [vmem:[#allocation2 + $0x30] sm:$0xf0] %v317
      %322 = vst [vmem:[#allocation2 + $0x38] sm:$0xf0] %v318
      %323 = vrot.lane.b32.xlu0 %v171, 111
      %v324 = vpop.permute.xlu0 %323
      %325 = vrot.lane.b32.xlu0 %v212, 111
      %v326 = vpop.permute.xlu0 %325
      %vm327 = vcmask 908288
      %v328 = vsel %vm327, %v324, %v326
      %v331 = vsel %vm327, %v326, 0.0
      %v332 = vmul.f32 %v328, %v203
      %v333 = vmul.f32 %v331, %v204
      %334 = vst [vmem:[#allocation2 + $0x40] sm:$0xf] %v332
      %335 = vst [vmem:[#allocation2 + $0x48] sm:$0xf] %v333
      %v336 = vld [vmem:[%s1] sm:$0xff]
      %v337 = vld [vmem:[#allocation2] sm:$0xff]
      %v338 = vld [vmem:[#allocation2 + $0x8] sm:$0xff]
      %v339 = vld [vmem:[#allocation2 + $0x10] sm:$0xff]
      %v340 = vld [vmem:[#allocation2 + $0x18] sm:$0xff]
      %v341 = vld [vmem:[#allocation2 + $0x20] sm:$0xff]
      %v342 = vld [vmem:[#allocation2 + $0x28] sm:$0xff]
      %v343 = vld [vmem:[#allocation2 + $0x30] sm:$0xff]
      %v344 = vld [vmem:[#allocation2 + $0x38] sm:$0xff]
      %v345 = vld [vmem:[#allocation2 + $0x40] sm:$0xf]
      %v346 = vld [vmem:[#allocation2 + $0x48] sm:$0xf]
      %v347 = vld [vmem:[%s2] sm:$0xff]
      %349 = vset.pattern.permute.xlu0 0
      %350 = vperm.xlu0 %349, %v347
      %v351 = vpop.permute.xlu0 %350
      %vm353 = vcmask 293888
      %v355 = vsel %vm353, %v336, 0
      %vm357 = vcmask 1043456
      %v359 = vsel %vm357, %v345, 0
      %v362 = vsel %vm357, %v346, 0
      %364 = vmatprep.subr.mxu0 %v338
      %365 = vmatpush1.msra.mxu0 %v337
      %366 = vmatprep.subr.mxu0 %v340
      %367 = vmatpush1.msra.mxu0 %v339
      %368 = vmatprep.subr.mxu0 %v342
      %369 = vmatpush1.msra.mxu0 %v341
      %370 = vmatprep.subr.mxu0 %v344
      %371 = vmatpush1.msra.mxu0 %v343
      %372 = vmatprep.subr.mxu0 %v362
      %373 = vmatpush1.msra.mxu0 %v359
      %374 = vmatprep.subr.mxu0 0.0
      %375 = vmatpush1.msra.mxu0 0.0
      %376 = vmatprep.subr.mxu0 0.0
      %377 = vmatpush1.msra.mxu0 0.0
      %378 = vmatprep.subr.mxu0 0.0
      %379 = vmatpush1.msra.mxu0 0.0
      %380 = vmatprep.subr.mxu0 0.0
      %381 = vmatpush1.msra.mxu0 0.0
      %382 = vmatprep.subr.mxu0 0.0
      %383 = vmatpush1.msra.mxu0 0.0
      %384 = vmatprep.subr.mxu0 0.0
      %385 = vmatpush1.msra.mxu0 0.0
      %386 = vmatprep.subr.mxu0 0.0
      %387 = vmatpush1.msra.mxu0 0.0
      %388 = vmatprep.subr.mxu0 0.0
      %389 = vmatpush1.msra.mxu0 0.0
      %390 = vmatprep.subr.mxu0 0.0
      %391 = vmatpush1.msra.mxu0 0.0
      %392 = vmatprep.subr.mxu0 0.0
      %393 = vmatpush1.msra.mxu0 0.0
      %394 = vmatprep.subr.mxu0 0.0
      %395 = vmatpush1.msra.mxu0 0.0
      %396 = vmatprep.subr.mxu0 0.0
      %397 = vmatpush1.msra.mxu0 0.0
      %398 = vmatprep.subr.mxu0 0.0
      %399 = vmatpush1.msra.mxu0 0.0
      %400 = vmatprep.subr.mxu0 0.0
      %401 = vmatpush1.msra.mxu0 0.0
      %402 = vmatprep.subr.mxu0 0.0
      %403 = vmatpush1.msra.mxu0 0.0
      %404 = vmatprep.subr.mxu0 0.0
      %405 = vmatpush1.msra.mxu0 0.0
      %406 = vmatprep.subr.mxu0 0.0
      %407 = vmatpush1.msra.mxu0 0.0
      %408 = vmatprep.subr.mxu0 0.0
      %409 = vmatpush1.msra.mxu0 0.0
      %410 = vmatprep.subr.mxu0 0.0
      %411 = vmatpush1.msra.mxu0 0.0
      %412 = vmatprep.subr.mxu0 0.0
      %413 = vmatpush1.msra.mxu0 0.0
      %414 = vmatprep.subr.mxu0 0.0
      %415 = vmatpush1.msra.mxu0 0.0
      %416 = vmatprep.subr.mxu0 0.0
      %417 = vmatpush1.msra.mxu0 0.0
      %418 = vmatprep.subr.mxu0 0.0
      %419 = vmatpush1.msra.mxu0 0.0
      %420 = vmatprep.subr.mxu0 0.0
      %421 = vmatpush1.msra.mxu0 0.0
      %422 = vmatprep.subr.mxu0 0.0
      %423 = vmatpush1.msra.mxu0 0.0
      %424 = vmatprep.subr.mxu0 0.0
      %425 = vmatpush1.msra.mxu0 0.0
      %426 = vmatprep.subr.mxu0 0.0
      %427 = vmatpush1.msra.mxu0 0.0
      %428 = vmatprep.mubr.f32.mxu0 0.0
      %429 = vmatmul.mubr.f32.gmra.mrb[0].mxu0 %v355
      %v430 = vpop.f32.mrb[0].mxu0
      %v431 = vadd.f32 %v351, %v430
      %v432 = vpop.f32.mrb[0].mxu0
      %v433 = vadd.f32 %v351, %v432
      %434 = vdwg.mxu0
      %v435 = vmax.f32 %v431, 0.0
      %v436 = vmax.f32 %v433, 0.0
      %437 = vst [vmem:[%s170] sm:$0xff] %v435
      %438 = vst [vmem:[%s170 + $0x8] sm:$0xff] %v436
      %p439 = scmp.lt.s32.totalorder %s14, 1
      %s440 = scalar_select %p439, %s14, 1
      %s441 = smul.addr %s440, 2
      %s442 = smul.addr %s441, 8
      %s443 = scalar_lea.vmem %s3, %s442
      // Predicated region
      $region33: #{equivariant_block.1} parent=31 // pred_check
        %p444 = pneg %p100
      $region34: #{equivariant_block.1} parent=31 // pred_check_branch
        %446 = sbr.rel (%p444) target = $region36
      $region35: #{equivariant_block.1} parent=31 // pred_region
        _
      $region36: #{equivariant_block.1} parent=31 // pred_fallthru
        _
    $region32: #{equivariant_block.1} parent=5 // pred_fallthru
      _
    %p447 = scmp.le.s32.totalorder 2, %s9
    // Predicated region
    $region37: #{equivariant_block.1} parent=5 // pred_check
      %p448 = pneg %p447
    $region38: #{equivariant_block.1} parent=5 // pred_check_branch
      %450 = sbr.rel (%p448) target = $region40
    $region39: #{equivariant_block.1} parent=5 // pred_region
      %s451 = ssub.s32 %s9, 2
      // Predicated region
      $region41: #{equivariant_block.1} parent=39 // pred_check
        %p452 = pneg %p106
      $region42: #{equivariant_block.1} parent=39 // pred_check_branch
        %454 = sbr.rel (%p452) target = $region44
      $region43: #{equivariant_block.1} parent=39 // pred_region
        %p455 = scmp.lt.s32.totalorder %s15, 1
        %s456 = scalar_select %p455, %s15, 1
        %s457 = smul.addr %s456, 2
        %s458 = smul.addr %s457, 8
        %s459 = scalar_lea.vmem %s3, %s458
      $region44: #{equivariant_block.1} parent=39 // pred_fallthru
        _
    $region40: #{equivariant_block.1} parent=5 // pred_fallthru
      _
  $region6: #{equivariant_block.1} parent=0 // loop_footer
    %s13 = sadd.s32 1, %s9
  $region7: #{equivariant_block.1} parent=0 // loop_footer_branch
    %8 = sbr.rel target = $region3
  $region8: #{equivariant_block.1} parent=0 // loop_exit
    _

</llo_original>
